<compile_context>
chip_gen: v7x
topology: tpu7x:2x2x1
jax: 0.10.0
libtpu: 0.0.40
codegen_flags: <defaults>
</compile_context>

<pallas_src>
import functools

import jax
import jax.numpy as jnp
from jax.experimental import pallas as pl
from jax.experimental.pallas import tpu as pltpu


def _embeddings_kernel(eps, tok,
                       wid_ref, pid_ref,            # scalar-prefetch ids (SMEM)
                       word_hbm, pos_hbm,           # embedding tables (HBM, pl.ANY)
                       bias_ref,                    # (1,H) or (TOK,H) f32 type-emb bias
                       gamma_ref, beta_ref,         # (1,H) f32, VMEM resident
                       o_ref,                       # (TOK, H) output block
                       wbuf, pbuf, sem):            # scratch: gather buffers + DMA sems
    b = pl.program_id(0)
    base = b * tok

    # Issue one row DMA per token for the word and position gathers (fused gather).
    @pl.loop(0, tok)
    def _(r):
        wrow = wid_ref[base + r]
        prow = pid_ref[base + r]
        pltpu.make_async_copy(word_hbm.at[wrow], wbuf.at[r], sem.at[0]).start()
        pltpu.make_async_copy(pos_hbm.at[prow], pbuf.at[r], sem.at[1]).start()

    # Wait for all 2*TOK row copies (each wait consumes one row-sized completion).
    @pl.loop(0, tok)
    def _(r):
        pltpu.make_async_copy(word_hbm.at[0], wbuf.at[0], sem.at[0]).wait()
        pltpu.make_async_copy(pos_hbm.at[0], pbuf.at[0], sem.at[1]).wait()

    # Sum of embeddings in f32 (VPU), then LayerNorm over the hidden dim.
    s = (wbuf[...].astype(jnp.float32)
         + pbuf[...].astype(jnp.float32)
         + bias_ref[...])                            # bias already f32; (1,H) broadcasts
    mean = jnp.mean(s, axis=-1, keepdims=True)
    cen = s - mean
    var = jnp.mean(cen * cen, axis=-1, keepdims=True)
    inv = jax.lax.rsqrt(var + eps)                   # EUP rsqrt
    y = cen * inv * gamma_ref[...] + beta_ref[...]   # gamma/beta pre-cast to f32
    # TODO(synk): dropout is the inference identity; a training-mode dropout would use pltpu.prng_*.
    o_ref[...] = y.astype(o_ref.dtype)


def roberta_embeddings(input_ids, word_table, pos_table, tok_table, clus_table,
                       gamma, beta, *, padding_idx, eps,
                       token_type_ids=None, clus_type_ids=None, tok_block=128):
    """input_ids: [B,S] int; tables: [V,H]/[P,H]/[T,H]/[T,H]; gamma/beta: [H]."""
    # TODO(synk): the inputs_embeds / explicit position_ids entry points of the module are not implemented.
    B, S = input_ids.shape
    V, H = word_table.shape
    P = pos_table.shape[0]
    N = B * S
    out_dtype = word_table.dtype

    input_ids = input_ids.astype(jnp.int32)

    # Fairseq-style position ids (padding tokens keep padding_idx).
    mask = (input_ids != padding_idx).astype(jnp.int32)
    position_ids = jnp.cumsum(mask, axis=1) * mask + padding_idx
    # OOB guard for the row DMA; a no-op whenever the indices are in range
    # (PyTorch would raise on out-of-range indices instead of clamping).
    position_ids = jnp.clip(position_ids, 0, P - 1)

    wid = jnp.clip(input_ids.reshape(N), 0, V - 1)
    pid = position_ids.reshape(N)

    # Token-block size: sublane-dense (multiple of 8) and divides the padded N.
    tok = int(tok_block)
    if N < tok:
        tok = max(8, -(-N // 8) * 8)
    nb = -(-N // tok)
    n_pad = nb * tok
    if n_pad != N:
        wid = jnp.pad(wid, (0, n_pad - N))          # padded slots gather row 0 (valid)
        pid = jnp.pad(pid, (0, n_pad - N))

    gamma_f = gamma.astype(jnp.float32).reshape(1, H)
    beta_f = beta.astype(jnp.float32).reshape(1, H)

    if token_type_ids is None and clus_type_ids is None:
        # Common path: both type-id tensors default to zeros -> one resident bias row.
        bias = (tok_table[0].astype(jnp.float32)
                + clus_table[0].astype(jnp.float32)).reshape(1, H)
        bias_spec = pl.BlockSpec((1, H), lambda b, wid, pid: (0, 0))
    else:
        tt = (jnp.zeros((B, S), jnp.int32) if token_type_ids is None
              else token_type_ids.astype(jnp.int32)).reshape(N)
        ct = (jnp.zeros((B, S), jnp.int32) if clus_type_ids is None
              else clus_type_ids.astype(jnp.int32)).reshape(N)
        bias = (tok_table[tt].astype(jnp.float32)
                + clus_table[ct].astype(jnp.float32))
        if n_pad != N:
            bias = jnp.pad(bias, ((0, n_pad - N), (0, 0)))
        bias_spec = pl.BlockSpec((tok, H), lambda b, wid, pid: (b, 0))

    grid_spec = pltpu.PrefetchScalarGridSpec(
        num_scalar_prefetch=2,                       # wid, pid land in SMEM
        grid=(nb,),
        in_specs=[
            pl.BlockSpec(memory_space=pl.ANY),       # word table stays in HBM
            pl.BlockSpec(memory_space=pl.ANY),       # position table stays in HBM
            bias_spec,                                            # type-emb bias
            pl.BlockSpec((1, H), lambda b, wid, pid: (0, 0)),     # gamma (f32, resident)
            pl.BlockSpec((1, H), lambda b, wid, pid: (0, 0)),     # beta  (f32, resident)
        ],
        out_specs=pl.BlockSpec((tok, H), lambda b, wid, pid: (b, 0)),
        scratch_shapes=[
            pltpu.VMEM((tok, H), word_table.dtype),  # gathered word rows
            pltpu.VMEM((tok, H), pos_table.dtype),   # gathered position rows
            pltpu.SemaphoreType.DMA((2,)),           # word / position copy semaphores
        ],
    )

    isz = lambda d: jnp.dtype(d).itemsize
    cost = pl.CostEstimate(
        flops=int(8 * n_pad * H),
        transcendentals=int(n_pad),
        bytes_accessed=int(n_pad * H * (isz(word_table.dtype) + isz(pos_table.dtype)
                                        + isz(out_dtype)) + 8 * n_pad),
    )

    out = pl.pallas_call(
        functools.partial(_embeddings_kernel, float(eps), tok),
        grid_spec=grid_spec,
        out_shape=jax.ShapeDtypeStruct((n_pad, H), out_dtype),
        compiler_params=pltpu.CompilerParams(
            dimension_semantics=("parallel",),        # stateless blocks -> megacore on v7x
            vmem_limit_bytes=32 * 1024 * 1024),       # above v5e's 16 MiB default scope
        cost_estimate=cost,
    )(wid, pid, word_table, pos_table, bias, gamma_f, beta_f)

    # Dropout: eval-mode identity.  Drop padding rows and restore [B, S, H].
    return out[:N].reshape(B, S, H)


if __name__ == "__main__":
    # Small shapes consistent with the module: batch=2, seq=8, hidden=32.
    B, S, H = 2, 8, 32
    VOCAB, MAX_POS, TYPE_VOCAB = 100, 64, 2
    PAD = 1
    EPS = 1e-5

    key = jax.random.PRNGKey(0)
    k_ids, k_w, k_p, k_t, k_c, k_g, k_b, k_tt, k_ct = jax.random.split(key, 9)

    input_ids = jax.random.randint(k_ids, (B, S), minval=3, maxval=VOCAB, dtype=jnp.int32)
    input_ids = input_ids.at[1, 6:].set(PAD)   # padding to exercise the position-id logic

    word_table = jax.random.normal(k_w, (VOCAB, H), jnp.float32) * 0.02
    pos_table = jax.random.normal(k_p, (MAX_POS, H), jnp.float32) * 0.02
    tok_table = jax.random.normal(k_t, (TYPE_VOCAB, H), jnp.float32) * 0.02
    clus_table = jax.random.normal(k_c, (TYPE_VOCAB, H), jnp.float32) * 0.02
    # nn.Embedding(padding_idx=...) zero-initializes the padding rows.
    word_table = word_table.at[PAD].set(0.0)
    pos_table = pos_table.at[PAD].set(0.0)

    gamma = 1.0 + 0.1 * jax.random.normal(k_g, (H,), jnp.float32)
    beta = 0.1 * jax.random.normal(k_b, (H,), jnp.float32)

    def reference(ids, tt_ids=None, ct_ids=None):
        m = (ids != PAD).astype(jnp.int32)
        p_ids = jnp.cumsum(m, axis=1) * m + PAD
        tt = jnp.zeros_like(ids) if tt_ids is None else tt_ids
        ct = jnp.zeros_like(ids) if ct_ids is None else ct_ids
        e = word_table[ids] + pos_table[p_ids] + tok_table[tt] + clus_table[ct]
        mu = e.mean(-1, keepdims=True)
        var = ((e - mu) ** 2).mean(-1, keepdims=True)
        return (e - mu) / jnp.sqrt(var + EPS) * gamma + beta

    # Default path (token_type_ids / clus_type_ids are None).
    out = roberta_embeddings(input_ids, word_table, pos_table, tok_table, clus_table,
                             gamma, beta, padding_idx=PAD, eps=EPS)
    out = jax.block_until_ready(out)
    ref = reference(input_ids)
    assert out.shape == (B, S, H)
    assert jnp.allclose(out, ref, atol=1e-4, rtol=1e-4), float(jnp.max(jnp.abs(out - ref)))

    # General path (explicit type ids) exercises the per-token bias block.
    tt_ids = jax.random.randint(k_tt, (B, S), 0, TYPE_VOCAB, dtype=jnp.int32)
    ct_ids = jax.random.randint(k_ct, (B, S), 0, TYPE_VOCAB, dtype=jnp.int32)
    out2 = roberta_embeddings(input_ids, word_table, pos_table, tok_table, clus_table,
                              gamma, beta, padding_idx=PAD, eps=EPS,
                              token_type_ids=tt_ids, clus_type_ids=ct_ids)
    out2 = jax.block_until_ready(out2)
    ref2 = reference(input_ids, tt_ids, ct_ids)
    assert jnp.allclose(out2, ref2, atol=1e-4, rtol=1e-4), float(jnp.max(jnp.abs(out2 - ref2)))

    print("KERNEL_OK")
</pallas_src>

<mosaic_0001>
module attributes {stable_mosaic.version = 11 : i64} {
  func.func @_embeddings_kernel(%arg0: i32, %arg1: memref<16xi32, #tpu.memory_space<smem>>, %arg2: memref<16xi32, #tpu.memory_space<smem>>, %arg3: memref<100x32xf32, #tpu.memory_space<any>>, %arg4: memref<64x32xf32, #tpu.memory_space<any>>, %arg5: memref<1x32xf32, #tpu.memory_space<vmem>>, %arg6: memref<1x32xf32, #tpu.memory_space<vmem>>, %arg7: memref<1x32xf32, #tpu.memory_space<vmem>>, %arg8: memref<16x32xf32, #tpu.memory_space<vmem>>, %arg9: memref<16x32xf32, #tpu.memory_space<vmem>>, %arg10: memref<16x32xf32, #tpu.memory_space<vmem>>, %arg11: memref<2x!tpu.dma_semaphore, #tpu.memory_space<semaphore_mem>>) attributes {dimension_semantics = [#tpu.dimension_semantics<parallel>], iteration_bounds = array<i64: 1>, scalar_prefetch = 2 : i64, scratch_operands = 3 : i64, tpu.core_type = #tpu.core_type<tc>, window_params = [{}, {}, {pipeline_mode = #tpu.pipeline_mode<synchronous>, transform_indices = @transform_2, window_bounds = array<i64: 1, 32>}, {pipeline_mode = #tpu.pipeline_mode<synchronous>, transform_indices = @transform_3, window_bounds = array<i64: 1, 32>}, {pipeline_mode = #tpu.pipeline_mode<synchronous>, transform_indices = @transform_4, window_bounds = array<i64: 1, 32>}, {transform_indices = @transform_5, window_bounds = array<i64: 16, 32>}]} {
    %c16_i32 = arith.constant 16 : i32
    %0 = arith.muli %arg0, %c16_i32 : i32
    %c0_i32 = arith.constant 0 : i32
    %c16_i32_0 = arith.constant 16 : i32
    %1 = arith.addi %c0_i32, %c16_i32_0 : i32
    %c1_i32 = arith.constant 1 : i32
    scf.for %arg12 = %c0_i32 to %1 step %c1_i32  : i32 {
      %c1_i32_20 = arith.constant 1 : i32
      %32 = arith.muli %arg12, %c1_i32_20 : i32
      %c0_i32_21 = arith.constant 0 : i32
      %33 = arith.addi %c0_i32_21, %32 : i32
      %34 = arith.addi %0, %33 : i32
      %35 = arith.index_cast %34 : i32 to index
      %36 = memref.load %arg1[%35] : memref<16xi32, #tpu.memory_space<smem>>
      %37 = arith.addi %0, %33 : i32
      %38 = arith.index_cast %37 : i32 to index
      %39 = memref.load %arg2[%38] : memref<16xi32, #tpu.memory_space<smem>>
      %c0_i32_22 = arith.constant 0 : i32
      %c0_i32_23 = arith.constant 0 : i32
      %40 = tpu.memref_slice %arg3[%36, %c0_i32_23] : memref<100x32xf32, #tpu.memory_space<any>> -> memref<1x32xf32, #tpu.memory_space<any>>
      %41 = tpu.memref_squeeze %40 : memref<1x32xf32, #tpu.memory_space<any>> -> memref<32xf32, #tpu.memory_space<any>>
      %c0_i32_24 = arith.constant 0 : i32
      %42 = tpu.memref_slice %arg9[%33, %c0_i32_24] : memref<16x32xf32, #tpu.memory_space<vmem>> -> memref<1x32xf32, #tpu.memory_space<vmem>>
      %43 = tpu.memref_squeeze %42 : memref<1x32xf32, #tpu.memory_space<vmem>> -> memref<32xf32, #tpu.memory_space<vmem>>
      %44 = tpu.memref_slice %arg11[%c0_i32_22] : memref<2x!tpu.dma_semaphore, #tpu.memory_space<semaphore_mem>> -> memref<1x!tpu.dma_semaphore, #tpu.memory_space<semaphore_mem>>
      %45 = tpu.memref_squeeze %44 : memref<1x!tpu.dma_semaphore, #tpu.memory_space<semaphore_mem>> -> memref<!tpu.dma_semaphore, #tpu.memory_space<semaphore_mem>>
      tpu.enqueue_dma source(%41 : memref<32xf32, #tpu.memory_space<any>>) target(%43 : memref<32xf32, #tpu.memory_space<vmem>>) target_semaphore(%45 : memref<!tpu.dma_semaphore, #tpu.memory_space<semaphore_mem>>)
      %c1_i32_25 = arith.constant 1 : i32
      %c0_i32_26 = arith.constant 0 : i32
      %46 = tpu.memref_slice %arg4[%39, %c0_i32_26] : memref<64x32xf32, #tpu.memory_space<any>> -> memref<1x32xf32, #tpu.memory_space<any>>
      %47 = tpu.memref_squeeze %46 : memref<1x32xf32, #tpu.memory_space<any>> -> memref<32xf32, #tpu.memory_space<any>>
      %c0_i32_27 = arith.constant 0 : i32
      %48 = tpu.memref_slice %arg10[%33, %c0_i32_27] : memref<16x32xf32, #tpu.memory_space<vmem>> -> memref<1x32xf32, #tpu.memory_space<vmem>>
      %49 = tpu.memref_squeeze %48 : memref<1x32xf32, #tpu.memory_space<vmem>> -> memref<32xf32, #tpu.memory_space<vmem>>
      %50 = tpu.memref_slice %arg11[%c1_i32_25] : memref<2x!tpu.dma_semaphore, #tpu.memory_space<semaphore_mem>> -> memref<1x!tpu.dma_semaphore, #tpu.memory_space<semaphore_mem>>
      %51 = tpu.memref_squeeze %50 : memref<1x!tpu.dma_semaphore, #tpu.memory_space<semaphore_mem>> -> memref<!tpu.dma_semaphore, #tpu.memory_space<semaphore_mem>>
      tpu.enqueue_dma source(%47 : memref<32xf32, #tpu.memory_space<any>>) target(%49 : memref<32xf32, #tpu.memory_space<vmem>>) target_semaphore(%51 : memref<!tpu.dma_semaphore, #tpu.memory_space<semaphore_mem>>)
    }
    %c16_i32_1 = arith.constant 16 : i32
    %c0_i32_2 = arith.constant 0 : i32
    %c16_i32_3 = arith.constant 16 : i32
    %2 = arith.addi %c0_i32_2, %c16_i32_3 : i32
    %c1_i32_4 = arith.constant 1 : i32
    scf.for %arg12 = %c0_i32_2 to %2 step %c1_i32_4  : i32 {
      %c0_i32_20 = arith.constant 0 : i32
      %c0_i32_21 = arith.constant 0 : i32
      %c0_i32_22 = arith.constant 0 : i32
      %c0_i32_23 = arith.constant 0 : i32
      %32 = tpu.memref_slice %arg3[%c0_i32_20, %c0_i32_23] : memref<100x32xf32, #tpu.memory_space<any>> -> memref<1x32xf32, #tpu.memory_space<any>>
      %33 = tpu.memref_squeeze %32 : memref<1x32xf32, #tpu.memory_space<any>> -> memref<32xf32, #tpu.memory_space<any>>
      %c0_i32_24 = arith.constant 0 : i32
      %34 = tpu.memref_slice %arg9[%c0_i32_21, %c0_i32_24] : memref<16x32xf32, #tpu.memory_space<vmem>> -> memref<1x32xf32, #tpu.memory_space<vmem>>
      %35 = tpu.memref_squeeze %34 : memref<1x32xf32, #tpu.memory_space<vmem>> -> memref<32xf32, #tpu.memory_space<vmem>>
      %36 = tpu.memref_slice %arg11[%c0_i32_22] : memref<2x!tpu.dma_semaphore, #tpu.memory_space<semaphore_mem>> -> memref<1x!tpu.dma_semaphore, #tpu.memory_space<semaphore_mem>>
      %37 = tpu.memref_squeeze %36 : memref<1x!tpu.dma_semaphore, #tpu.memory_space<semaphore_mem>> -> memref<!tpu.dma_semaphore, #tpu.memory_space<semaphore_mem>>
      tpu.wait_dma2 semaphore(%37 : memref<!tpu.dma_semaphore, #tpu.memory_space<semaphore_mem>>) src(%33 : memref<32xf32, #tpu.memory_space<any>>) dst(%35 : memref<32xf32, #tpu.memory_space<vmem>>)
      %c0_i32_25 = arith.constant 0 : i32
      %c0_i32_26 = arith.constant 0 : i32
      %c1_i32_27 = arith.constant 1 : i32
      %c0_i32_28 = arith.constant 0 : i32
      %38 = tpu.memref_slice %arg4[%c0_i32_25, %c0_i32_28] : memref<64x32xf32, #tpu.memory_space<any>> -> memref<1x32xf32, #tpu.memory_space<any>>
      %39 = tpu.memref_squeeze %38 : memref<1x32xf32, #tpu.memory_space<any>> -> memref<32xf32, #tpu.memory_space<any>>
      %c0_i32_29 = arith.constant 0 : i32
      %40 = tpu.memref_slice %arg10[%c0_i32_26, %c0_i32_29] : memref<16x32xf32, #tpu.memory_space<vmem>> -> memref<1x32xf32, #tpu.memory_space<vmem>>
      %41 = tpu.memref_squeeze %40 : memref<1x32xf32, #tpu.memory_space<vmem>> -> memref<32xf32, #tpu.memory_space<vmem>>
      %42 = tpu.memref_slice %arg11[%c1_i32_27] : memref<2x!tpu.dma_semaphore, #tpu.memory_space<semaphore_mem>> -> memref<1x!tpu.dma_semaphore, #tpu.memory_space<semaphore_mem>>
      %43 = tpu.memref_squeeze %42 : memref<1x!tpu.dma_semaphore, #tpu.memory_space<semaphore_mem>> -> memref<!tpu.dma_semaphore, #tpu.memory_space<semaphore_mem>>
      tpu.wait_dma2 semaphore(%43 : memref<!tpu.dma_semaphore, #tpu.memory_space<semaphore_mem>>) src(%39 : memref<32xf32, #tpu.memory_space<any>>) dst(%41 : memref<32xf32, #tpu.memory_space<vmem>>)
    }
    %c0 = arith.constant 0 : index
    %c0_5 = arith.constant 0 : index
    %3 = vector.load %arg9[%c0, %c0_5] : memref<16x32xf32, #tpu.memory_space<vmem>>, vector<16x32xf32>
    %c0_6 = arith.constant 0 : index
    %c0_7 = arith.constant 0 : index
    %4 = vector.load %arg10[%c0_6, %c0_7] : memref<16x32xf32, #tpu.memory_space<vmem>>, vector<16x32xf32>
    %5 = arith.addf %3, %4 : vector<16x32xf32>
    %c0_8 = arith.constant 0 : index
    %c0_9 = arith.constant 0 : index
    %6 = vector.load %arg5[%c0_8, %c0_9] : memref<1x32xf32, #tpu.memory_space<vmem>>, vector<1x32xf32>
    %7 = vector.broadcast %6 : vector<1x32xf32> to vector<16x32xf32>
    %8 = arith.addf %5, %7 : vector<16x32xf32>
    %cst = arith.constant dense<0.000000e+00> : vector<16xf32>
    %9 = vector.multi_reduction <add>, %8, %cst [1] : vector<16x32xf32> to vector<16xf32>
    %10 = vector.shape_cast %9 : vector<16xf32> to vector<16x1xf32>
    %cst_10 = arith.constant 3.200000e+01 : f32
    %11 = vector.broadcast %cst_10 : f32 to vector<16x1xf32>
    %12 = arith.divf %10, %11 : vector<16x1xf32>
    %13 = vector.broadcast %12 : vector<16x1xf32> to vector<16x32xf32>
    %14 = arith.subf %8, %13 : vector<16x32xf32>
    %15 = arith.mulf %14, %14 : vector<16x32xf32>
    %cst_11 = arith.constant dense<0.000000e+00> : vector<16xf32>
    %16 = vector.multi_reduction <add>, %15, %cst_11 [1] : vector<16x32xf32> to vector<16xf32>
    %17 = vector.shape_cast %16 : vector<16xf32> to vector<16x1xf32>
    %cst_12 = arith.constant 3.200000e+01 : f32
    %18 = vector.broadcast %cst_12 : f32 to vector<16x1xf32>
    %19 = arith.divf %17, %18 : vector<16x1xf32>
    %cst_13 = arith.constant 9.99999974E-6 : f32
    %20 = vector.broadcast %cst_13 : f32 to vector<16x1xf32>
    %21 = arith.addf %19, %20 : vector<16x1xf32>
    %22 = math.rsqrt %21 : vector<16x1xf32>
    %23 = vector.broadcast %22 : vector<16x1xf32> to vector<16x32xf32>
    %24 = arith.mulf %14, %23 : vector<16x32xf32>
    %c0_14 = arith.constant 0 : index
    %c0_15 = arith.constant 0 : index
    %25 = vector.load %arg6[%c0_14, %c0_15] : memref<1x32xf32, #tpu.memory_space<vmem>>, vector<1x32xf32>
    %26 = vector.broadcast %25 : vector<1x32xf32> to vector<16x32xf32>
    %27 = arith.mulf %24, %26 : vector<16x32xf32>
    %c0_16 = arith.constant 0 : index
    %c0_17 = arith.constant 0 : index
    %28 = vector.load %arg7[%c0_16, %c0_17] : memref<1x32xf32, #tpu.memory_space<vmem>>, vector<1x32xf32>
    %29 = vector.broadcast %28 : vector<1x32xf32> to vector<16x32xf32>
    %30 = arith.addf %27, %29 : vector<16x32xf32>
    %c0_18 = arith.constant 0 : index
    %c0_19 = arith.constant 0 : index
    %31 = vector.load %arg8[%c0_18, %c0_19] : memref<16x32xf32, #tpu.memory_space<vmem>>, vector<16x32xf32>
    tpu.vector_store %arg8[%c0_18, %c0_19], %30 {strides = array<i32>} : memref<16x32xf32, #tpu.memory_space<vmem>>, vector<16x32xf32>,
    return
  }
  func.func @transform_2(%arg0: i32, %arg1: memref<16xi32, #tpu.memory_space<smem>>, %arg2: memref<16xi32, #tpu.memory_space<smem>>) -> (i32, i32) {
    %c0_i32 = arith.constant 0 : i32
    %c0_i32_0 = arith.constant 0 : i32
    %c0_i32_1 = arith.constant 0 : i32
    return %c0_i32, %c0_i32_0 : i32, i32
  }
  func.func @transform_3(%arg0: i32, %arg1: memref<16xi32, #tpu.memory_space<smem>>, %arg2: memref<16xi32, #tpu.memory_space<smem>>) -> (i32, i32) {
    %c0_i32 = arith.constant 0 : i32
    %c0_i32_0 = arith.constant 0 : i32
    %c0_i32_1 = arith.constant 0 : i32
    return %c0_i32, %c0_i32_0 : i32, i32
  }
  func.func @transform_4(%arg0: i32, %arg1: memref<16xi32, #tpu.memory_space<smem>>, %arg2: memref<16xi32, #tpu.memory_space<smem>>) -> (i32, i32) {
    %c0_i32 = arith.constant 0 : i32
    %c0_i32_0 = arith.constant 0 : i32
    %c0_i32_1 = arith.constant 0 : i32
    return %c0_i32, %c0_i32_0 : i32, i32
  }
  func.func @transform_5(%arg0: i32, %arg1: memref<16xi32, #tpu.memory_space<smem>>, %arg2: memref<16xi32, #tpu.memory_space<smem>>) -> (i32, i32) {
    %c0_i32 = arith.constant 0 : i32
    %c0_i32_0 = arith.constant 0 : i32
    return %arg0, %c0_i32 : i32, i32
  }
}

</mosaic_0001>

<llo_original>
// kernel: tpu_custom_call.1
$region0: #{tpu_custom_call.1}
  #allocation0 [shape = 'u32[]', space=smem, size = 0x4, offset = 0x4, fixed_abs, tag = 'smem constant byte address 0x4 - core index']
  #allocation1 [shape = 'u32[144,128]{1,0:T(1,128)}', space=vmem, size = 0x12000, scoped, tag = 'internal scratch']
  #allocation2 [shape = 'f32[16,32]{1,0:T(8,128)}', space=vmem, size = 0x2000, scoped, tag = 'scratch operand']
  #allocation3 [shape = 'f32[16,32]{1,0:T(8,128)}', space=vmem, size = 0x2000, scoped, tag = 'scratch operand']
  #allocation4 [shape = 's32[2]{0}', space=sflag, size = 0x8, scoped, tag = 'scratch operand']
  #allocation5 [shape = 's32[1]{0}', space=sflag, size = 0x4, scoped, tag = 'scoped memory for tpu_custom_call.1']
  #allocation6 [shape = 'u8[512]{0}', space=smem, size = 0x200, scoped, tag = 'prefetched SMEM operand 0']
  #allocation7 [shape = 'u8[512]{0}', space=smem, size = 0x200, scoped, tag = 'prefetched SMEM operand 1']
  #allocation10 [shape = 's32[]', space=sflag, size = 0x4, offset = 0, fixed_abs, tag = 'sflag constant byte address 0x0 - dummy sync flag']
  #allocation11 [shape = 's32[]', space=sflag, size = 0x4, offset = 0, fixed_abs, tag = 'sflag constant byte address 0x0 - dummy sync flag']
  %s0 = inlined_call_operand.vmem [shape: s32[16], index: 0, kind: input, shape index: {}]
  %s1 = inlined_call_operand.vmem [shape: s32[16], index: 1, kind: input, shape index: {}]
  %s2 = inlined_call_operand.vmem [shape: f32[100,32], index: 2, kind: input, shape index: {}]
  %s3 = inlined_call_operand.vmem [shape: f32[64,32], index: 3, kind: input, shape index: {}]
  %s4 = inlined_call_operand.vmem [shape: f32[1,32], index: 4, kind: input, shape index: {}]
  %s5 = inlined_call_operand.vmem [shape: f32[1,32], index: 5, kind: input, shape index: {}]
  %s6 = inlined_call_operand.vmem [shape: f32[1,32], index: 6, kind: input, shape index: {}]
  %s7 = inlined_call_operand.hbm [shape: f32[16,32], index: 7, kind: output, shape index: {}]
  %s8 = sld [smem:[#allocation0]]
  $region96: #{tpu_custom_call.1} parent=0
    _
  %s10 = ssub.s32 1, %s8
  %s11 = scalar_select 0, %s10, %s8
  %s12 = sshll.u32 %s0, 4
  %s13 = int_to_ptr.vmem [resolvable:$true] %s12
  %15 = dma.vmem_to_smem %s13, 16, [#allocation6], [#allocation5]
  %s16 = sshll.u32 %s1, 4
  %s17 = int_to_ptr.vmem [resolvable:$true] %s16
  %19 = dma.vmem_to_smem %s17, 16, [#allocation7], [#allocation5]
  %20 = dma.done [#allocation5], 32
  %21 = sfence
  $region1: #{tpu_custom_call.1} parent=0
    #allocation8 [shape = 'u8[8192]{0}', space=vmem, size = 0x2000, scoped, tag = 'output window, operand 0, single buffered']
    #allocation9 [shape = 's32[1]{0}', space=sflag, size = 0x4, scoped, tag = 'scoped memory for tpu_custom_call.1']
    %22 = vsyncpa [#allocation9], 0
    // Predicated region
    $region2: #{tpu_custom_call.1} parent=1 // pred_check
      _
    $region3: #{tpu_custom_call.1} parent=1 // pred_check_branch
      %24 = sbr.rel (0) target = $region5
    $region4: #{tpu_custom_call.1} parent=1 // pred_region
      _
    $region5: #{tpu_custom_call.1} parent=1 // pred_fallthru
      _
    // Predicated region
    $region6: #{tpu_custom_call.1} parent=1 // pred_check
      _
    $region7: #{tpu_custom_call.1} parent=1 // pred_check_branch
      %26 = sbr.rel (0) target = $region9
    $region8: #{tpu_custom_call.1} parent=1 // pred_region
      _
    $region9: #{tpu_custom_call.1} parent=1 // pred_fallthru
      _
    // Predicated region
    $region10: #{tpu_custom_call.1} parent=1 // pred_check
      _
    $region11: #{tpu_custom_call.1} parent=1 // pred_check_branch
      %28 = sbr.rel (0) target = $region13
    $region12: #{tpu_custom_call.1} parent=1 // pred_region
      _
    $region13: #{tpu_custom_call.1} parent=1 // pred_fallthru
      _
    %s29 = smul.u32 0, 16
    loop: start=0, step=1, limit=16
    $region14: #{tpu_custom_call.1} parent=1 // loop_pre_header
      _
    $region15: #{tpu_custom_call.1} parent=1 // loop_header
      %s31 = sphi 0, %s35
      %p32 = scmp.ge.s32.totalorder %s31, 16
    $region16: #{tpu_custom_call.1} parent=1 // loop_header_branch
      %34 = sbr.rel (%p32) target = $region20
    $region17: #{tpu_custom_call.1} parent=1 // loop_body
      %s36 = sadd.s32 %s29, %s31
      %s37 = sld [smem:[#allocation6 + %s36]]
      %s38 = sld [smem:[#allocation7 + %s36]]
      %s39 = scalar_lea.vmem %s2, %s37
      %s40 = scalar_lea.vmem [#allocation2], %s31
      %p42 = scmp.lt.u32.totalorder 1, 8
      %p43 = pneg %p42
      // Predicated region
      $region21: #{tpu_custom_call.1} parent=17 // pred_check
        _
      $region22: #{tpu_custom_call.1} parent=17 // pred_check_branch
        %45 = sbr.rel (%p42) target = $region24
      $region23: #{tpu_custom_call.1} parent=17 // pred_region
        %s60 = sand.u32 1, 7
        %p61 = scmp.eq.s32.totalorder %s60, 0
        %p62 = pneg %p61
        // Predicated region
        $region36: #{tpu_custom_call.1} parent=23 // pred_check
          _
        $region37: #{tpu_custom_call.1} parent=23 // pred_check_branch
          %64 = sbr.rel (%p61) target = $region39
        $region38: #{tpu_custom_call.1} parent=23 // pred_region
          %s65 = sand.u32 1, 7
          %s66 = ssub.s32 1, %s65
          %s67 = scalar_lea.vmem %s39, %s66
          %s68 = ssub.s32 1, %s65
          %s69 = scalar_lea.vmem %s40, %s68 [#allocation2]
          %s70 = sshllo.u32 0, %s65
          loop: start=0, step=1, limit=1
          $region40: #{tpu_custom_call.1} parent=38 // loop_pre_header
            _
          $region41: #{tpu_custom_call.1} parent=38 // loop_header
            %s72 = sphi 0, %s76
            %p73 = scmp.ge.s32.totalorder %s72, 1
            %s77 = sphi %s67, %s67
            %s78 = sphi %s69, %s69
          $region42: #{tpu_custom_call.1} parent=38 // loop_header_branch
            %75 = sbr.rel (%p73) target = $region46
          $region43: #{tpu_custom_call.1} parent=38 // loop_body
            %v79 = vld [vmem:[%s77] sm:%s70]
            %80 = vst [vmem:[%s78] sm:%s70] %v79
          $region44: #{tpu_custom_call.1} parent=38 // loop_footer
            %s76 = sadd.s32 1, %s72
          $region45: #{tpu_custom_call.1} parent=38 // loop_footer_branch
            %71 = sbr.rel target = $region41
          $region46: #{tpu_custom_call.1} parent=38 // loop_exit
            _
        $region39: #{tpu_custom_call.1} parent=23 // pred_fallthru
          _
      $region24: #{tpu_custom_call.1} parent=17 // pred_fallthru
        _
      // Predicated region
      $region25: #{tpu_custom_call.1} parent=17 // pred_check
        %p46 = pneg %p42
      $region26: #{tpu_custom_call.1} parent=17 // pred_check_branch
        %48 = sbr.rel (%p46) target = $region28
      $region27: #{tpu_custom_call.1} parent=17 // pred_region
        %s49 = sshllo.u32 0, 1
        loop: start=0, step=1, limit=1
        $region29: #{tpu_custom_call.1} parent=27 // loop_pre_header
          _
        $region30: #{tpu_custom_call.1} parent=27 // loop_header
          %s51 = sphi 0, %s55
          %p52 = scmp.ge.s32.totalorder %s51, 1
          %s56 = sphi %s39, %s39
          %s57 = sphi %s40, %s40
        $region31: #{tpu_custom_call.1} parent=27 // loop_header_branch
          %54 = sbr.rel (%p52) target = $region35
        $region32: #{tpu_custom_call.1} parent=27 // loop_body
          %v58 = vld [vmem:[%s56] sm:%s49]
          %59 = vst [vmem:[%s57] sm:%s49] %v58
        $region33: #{tpu_custom_call.1} parent=27 // loop_footer
          %s55 = sadd.s32 1, %s51
        $region34: #{tpu_custom_call.1} parent=27 // loop_footer_branch
          %50 = sbr.rel target = $region30
        $region35: #{tpu_custom_call.1} parent=27 // loop_exit
          _
      $region28: #{tpu_custom_call.1} parent=17 // pred_fallthru
        _
      // Predicated region
      $region47: #{tpu_custom_call.1} parent=17 // pred_check
        _
      $region48: #{tpu_custom_call.1} parent=17 // pred_check_branch
        %83 = sbr.rel (0) target = $region50
      $region49: #{tpu_custom_call.1} parent=17 // pred_region
        %84 = vsyncadd [#allocation4], 16
      $region50: #{tpu_custom_call.1} parent=17 // pred_fallthru
        _
      %s85 = scalar_lea.vmem %s3, %s38
      %s86 = scalar_lea.vmem [#allocation3], %s31
      %s87 = scalar_lea.sflag [#allocation4], 1
      %p89 = scmp.lt.u32.totalorder 1, 8
      %p90 = pneg %p89
      // Predicated region
      $region51: #{tpu_custom_call.1} parent=17 // pred_check
        _
      $region52: #{tpu_custom_call.1} parent=17 // pred_check_branch
        %92 = sbr.rel (%p89) target = $region54
      $region53: #{tpu_custom_call.1} parent=17 // pred_region
        %s107 = sand.u32 1, 7
        %p108 = scmp.eq.s32.totalorder %s107, 0
        %p109 = pneg %p108
        // Predicated region
        $region66: #{tpu_custom_call.1} parent=53 // pred_check
          _
        $region67: #{tpu_custom_call.1} parent=53 // pred_check_branch
          %111 = sbr.rel (%p108) target = $region69
        $region68: #{tpu_custom_call.1} parent=53 // pred_region
          %s112 = sand.u32 1, 7
          %s113 = ssub.s32 1, %s112
          %s114 = scalar_lea.vmem %s85, %s113
          %s115 = ssub.s32 1, %s112
          %s116 = scalar_lea.vmem %s86, %s115 [#allocation3]
          %s117 = sshllo.u32 0, %s112
          loop: start=0, step=1, limit=1
          $region70: #{tpu_custom_call.1} parent=68 // loop_pre_header
            _
          $region71: #{tpu_custom_call.1} parent=68 // loop_header
            %s119 = sphi 0, %s123
            %p120 = scmp.ge.s32.totalorder %s119, 1
            %s124 = sphi %s114, %s114
            %s125 = sphi %s116, %s116
          $region72: #{tpu_custom_call.1} parent=68 // loop_header_branch
            %122 = sbr.rel (%p120) target = $region76
          $region73: #{tpu_custom_call.1} parent=68 // loop_body
            %v126 = vld [vmem:[%s124] sm:%s117]
            %127 = vst [vmem:[%s125] sm:%s117] %v126
          $region74: #{tpu_custom_call.1} parent=68 // loop_footer
            %s123 = sadd.s32 1, %s119
          $region75: #{tpu_custom_call.1} parent=68 // loop_footer_branch
            %118 = sbr.rel target = $region71
          $region76: #{tpu_custom_call.1} parent=68 // loop_exit
            _
        $region69: #{tpu_custom_call.1} parent=53 // pred_fallthru
          _
      $region54: #{tpu_custom_call.1} parent=17 // pred_fallthru
        _
      // Predicated region
      $region55: #{tpu_custom_call.1} parent=17 // pred_check
        %p93 = pneg %p89
      $region56: #{tpu_custom_call.1} parent=17 // pred_check_branch
        %95 = sbr.rel (%p93) target = $region58
      $region57: #{tpu_custom_call.1} parent=17 // pred_region
        %s96 = sshllo.u32 0, 1
        loop: start=0, step=1, limit=1
        $region59: #{tpu_custom_call.1} parent=57 // loop_pre_header
          _
        $region60: #{tpu_custom_call.1} parent=57 // loop_header
          %s98 = sphi 0, %s102
          %p99 = scmp.ge.s32.totalorder %s98, 1
          %s103 = sphi %s85, %s85
          %s104 = sphi %s86, %s86
        $region61: #{tpu_custom_call.1} parent=57 // loop_header_branch
          %101 = sbr.rel (%p99) target = $region65
        $region62: #{tpu_custom_call.1} parent=57 // loop_body
          %v105 = vld [vmem:[%s103] sm:%s96]
          %106 = vst [vmem:[%s104] sm:%s96] %v105
        $region63: #{tpu_custom_call.1} parent=57 // loop_footer
          %s102 = sadd.s32 1, %s98
        $region64: #{tpu_custom_call.1} parent=57 // loop_footer_branch
          %97 = sbr.rel target = $region60
        $region65: #{tpu_custom_call.1} parent=57 // loop_exit
          _
      $region58: #{tpu_custom_call.1} parent=17 // pred_fallthru
        _
      // Predicated region
      $region77: #{tpu_custom_call.1} parent=17 // pred_check
        _
      $region78: #{tpu_custom_call.1} parent=17 // pred_check_branch
        %130 = sbr.rel (0) target = $region80
      $region79: #{tpu_custom_call.1} parent=17 // pred_region
        %131 = vsyncadd %s87, 16
      $region80: #{tpu_custom_call.1} parent=17 // pred_fallthru
        _
    $region18: #{tpu_custom_call.1} parent=1 // loop_footer
      %s35 = sadd.s32 1, %s31
    $region19: #{tpu_custom_call.1} parent=1 // loop_footer_branch
      %30 = sbr.rel target = $region15
    $region20: #{tpu_custom_call.1} parent=1 // loop_exit
      _
    loop: start=0, step=1, limit=16
    $region81: #{tpu_custom_call.1} parent=1 // loop_pre_header
      _
    $region82: #{tpu_custom_call.1} parent=1 // loop_header
      %s133 = sphi 0, %s137
      %p134 = scmp.ge.s32.totalorder %s133, 16
    $region83: #{tpu_custom_call.1} parent=1 // loop_header_branch
      %136 = sbr.rel (%p134) target = $region87
    $region84: #{tpu_custom_call.1} parent=1 // loop_body
      %139 = dma.done [#allocation4], 16
      %s140 = scalar_lea.sflag [#allocation4], 1
      %142 = dma.done %s140, 16
    $region85: #{tpu_custom_call.1} parent=1 // loop_footer
      %s137 = sadd.s32 1, %s133
    $region86: #{tpu_custom_call.1} parent=1 // loop_footer_branch
      %132 = sbr.rel target = $region82
    $region87: #{tpu_custom_call.1} parent=1 // loop_exit
      _
    %v143 = vld [vmem:[#allocation2] sm:$0xff]
    %v144 = vld [vmem:[#allocation2 + $0x8] sm:$0xff]
    %v145 = vld [vmem:[#allocation3] sm:$0xff]
    %v146 = vld [vmem:[#allocation3 + $0x8] sm:$0xff]
    %v147 = vadd.f32 %v143, %v145
    %v148 = vadd.f32 %v144, %v146
    %v149 = vld [vmem:[%s4] sm:$0x1]
    %v151 = vlaneseq
    %v152 = vshrl.u32 %v151, 7
    %v153 = vsub.s32 0, %v152
    %v154 = vrot.slane %v149, %v153
    %v156 = vadd.f32 %v147, %v154
    %v157 = vadd.f32 %v148, %v154
    %vm158 = vcmask 261120
    %v159 = vsel %vm158, %v156, 0.0
    %160 = vadd.xlane.f32.xlu0 %v159
    %v161 = vpop.xlane.xlu0 %160
    %v162 = vsel %vm158, %v157, 0.0
    %163 = vadd.xlane.f32.xlu0 %v162
    %v164 = vpop.xlane.xlu0 %163
    %v165 = vrcp.pop 32.0
    %v166 = vmul.f32 %v161, %v165
    %v167 = vmul.f32 %v164, %v165
    %v168 = vsub.f32 %v156, %v166
    %v169 = vsub.f32 %v157, %v167
    %v170 = vmul.f32 %v168, %v168
    %v171 = vmul.f32 %v169, %v169
    %v172 = vsel %vm158, %v170, 0.0
    %173 = vadd.xlane.f32.xlu0 %v172
    %v174 = vpop.xlane.xlu0 %173
    %v175 = vsel %vm158, %v171, 0.0
    %176 = vadd.xlane.f32.xlu0 %v175
    %v177 = vpop.xlane.xlu0 %176
    %v178 = vmul.f32 %v174, %v165
    %v179 = vmul.f32 %v177, %v165
    %v180 = vadd.f32 %v178, 1e-05
    %v181 = vadd.f32 %v179, 1e-05
    %v182 = vrsqrt.pop %v180
    %v183 = vrsqrt.pop %v181
    %v184 = vmul.f32 %v168, %v182
    %v185 = vmul.f32 %v169, %v183
    %v186 = vld [vmem:[%s5] sm:$0x1]
    %v188 = vlaneseq
    %v189 = vshrl.u32 %v188, 7
    %v190 = vsub.s32 0, %v189
    %v191 = vrot.slane %v186, %v190
    %v193 = vmul.f32 %v184, %v191
    %v194 = vmul.f32 %v185, %v191
    %v195 = vld [vmem:[%s6] sm:$0x1]
    %v197 = vlaneseq
    %v198 = vshrl.u32 %v197, 7
    %v199 = vsub.s32 0, %v198
    %v200 = vrot.slane %v195, %v199
    %v202 = vadd.f32 %v193, %v200
    %v203 = vadd.f32 %v194, %v200
    %204 = vst.msk [vmem:[#allocation8] sm:$0xff] %vm158, %v202
    %205 = vst.msk [vmem:[#allocation8 + $0x8] sm:$0xff] %vm158, %v203
    // Predicated region
    $region88: #{tpu_custom_call.1} parent=1 // pred_check
      _
    $region89: #{tpu_custom_call.1} parent=1 // pred_check_branch
      %207 = sbr.rel (0) target = $region91
    $region90: #{tpu_custom_call.1} parent=1 // pred_region
      %s209 = ssub.s32 256, 256
      %210 = vsyncadd [#allocation9], %s209
      %s211 = sshll.u32 [#allocation8], 4
      %s212 = int_to_ptr.vmem [resolvable:$true] %s211
      %217 = dma.vmem_to_hbm [thread:$0]  %s212, 256, %s7, [#allocation9], 128, 128, 8
    $region91: #{tpu_custom_call.1} parent=1 // pred_fallthru
      _
    // Predicated region
    $region92: #{tpu_custom_call.1} parent=1 // pred_check
      _
    $region93: #{tpu_custom_call.1} parent=1 // pred_check_branch
      %219 = sbr.rel (0) target = $region95
    $region94: #{tpu_custom_call.1} parent=1 // pred_region
      %220 = dma.done [#allocation9], 256
    $region95: #{tpu_custom_call.1} parent=1 // pred_fallthru
      _
    %221 = vsyncpa [#allocation9], 1
  %222 = vsyncmov [#allocation4]
  %s223 = vpop.sfrf %222
  %p224 = scmp.eq.s32.totalorder %s223, 0
  %p225 = pneg %p224
  %227 = shalt.err (%p225)
  %s228 = scalar_lea.sflag [#allocation4], 1
  %229 = vsyncmov %s228
  %s230 = vpop.sfrf %229
  %p231 = scmp.eq.s32.totalorder %s230, 0
  %p232 = pneg %p231
  %234 = shalt.err (%p232)

</llo_original>
